<compile_context>
chip_gen: v7x
topology: tpu7x:2x2x1
jax: 0.10.0
libtpu: 0.0.40
codegen_flags: <defaults>
</compile_context>

<pallas_src>
import jax
import jax.numpy as jnp
from jax.experimental import pallas as pl
from jax.experimental.pallas import tpu as pltpu

_LANES = 128                            # TPU lane width; contraction dim of the expansion
_MAX_ROW_TILE = 2048                    # rows per grid step (upper bound)
_VMEM_TILE_BUDGET = 24 * 1024 * 1024    # budget for tiles + in-kernel f32 temporaries


def _round_up(n: int, m: int) -> int:
    return (n + m - 1) // m * m


def _choose_row_tile(num_rows: int, upsampling_factor: int, itemsize: int) -> int:
    """Row tile: sublane-aligned, VMEM-budgeted, and >=2 grid steps when possible."""
    U = upsampling_factor
    # Per-row VMEM bytes: double-buffered (tm,128) input + (tm,128U) output tiles,
    # plus ~two full-width f32 temporaries from the split-matmul / post-scale.
    per_row = _LANES * (2 * itemsize + 2 * U * itemsize + 2 * U * 4)
    max_tm = max(8, (_VMEM_TILE_BUDGET // per_row) // 8 * 8)
    tm = min(_MAX_ROW_TILE, max_tm)
    # Prefer at least 2 grid steps so both v7x TensorCores (megacore) get work.
    tm = min(tm, max(8, _round_up(-(-num_rows // 2), 8)))
    return min(tm, _round_up(num_rows, 8))


def _upsample_kernel(x_ref, s_ref, w_ref, b_ref, o_ref):
    # x_ref: (tm, 128)            activations (input dtype), lane-dense loads
    # s_ref: (128, 128*U) bf16    0/1 selection matrix S[t, t*U+k] = 1
    # w_ref: (1, 128*U)   f32     tiled taps  w_row[j] = w[j % U]
    # b_ref: (1,)         f32     bias scalar (SMEM)
    # o_ref: (tm, 128*U)          lane-dense output, unmasked full-width stores
    x = x_ref[...]
    s = s_ref[...]
    if x.dtype == jnp.float32:
        # Exact 3-pass expansion: x = hi + mid + lo (bf16 chunks).  RHS is 0/1, so every
        # bf16 product is exact and the f32 MXU accumulator reconstructs x exactly.
        hi = x.astype(jnp.bfloat16)
        r1 = x - hi.astype(jnp.float32)
        mid = r1.astype(jnp.bfloat16)
        lo = (r1 - mid.astype(jnp.float32)).astype(jnp.bfloat16)
        y = jnp.dot(hi, s, preferred_element_type=jnp.float32)
        y = y + jnp.dot(mid, s, preferred_element_type=jnp.float32)
        y = y + jnp.dot(lo, s, preferred_element_type=jnp.float32)
    else:
        # Reduced-precision inputs: a single DEFAULT pass already carries full precision.
        y = jnp.dot(x, s.astype(x.dtype), preferred_element_type=jnp.float32)
    # Tap weights + bias applied at full f32 on the VPU (single rounding, like the ref).
    o_ref[...] = (y * w_ref[...] + b_ref[0]).astype(o_ref.dtype)


def upsampling_forward(x, weight, bias, upsampling_factor, *, row_tile=None):
    """x: (B, C, T); weight: (U,) taps of the ConvTranspose2d; bias: (1,)."""
    B, C, T = x.shape
    U = int(upsampling_factor)
    weight = weight.reshape(-1)
    assert weight.shape[0] == U, "weight must hold the U deconvolution taps"
    dt = x.dtype
    itemsize = jnp.dtype(dt).itemsize
    M = B * C

    # ---- wrapper-side layout plumbing (cheap / free XLA reshapes) -------------------
    Tp = _round_up(T, _LANES)                       # pad time to the lane width
    x2d = x.reshape(M, T)
    if Tp != T:
        x2d = jnp.pad(x2d, ((0, 0), (0, Tp - T)))
    R = M * Tp // _LANES                            # fold 128-wide time chunks into rows
    xr = x2d.reshape(R, _LANES)                     # row-major reshape: no data movement

    if row_tile is None:
        tm = _choose_row_tile(R, U, itemsize)
    else:
        tm = max(8, _round_up(int(row_tile), 8))
    Rp = _round_up(R, tm)                           # ragged-row guard: pad, don't truncate
    if Rp != R:
        xr = jnp.pad(xr, ((0, Rp - R), (0, 0)))

    # 0/1 selection matrix S[t, j] = (j // U == t); exactly representable in bf16.
    j = jnp.arange(_LANES * U)
    s_dt = jnp.bfloat16 if dt == jnp.float32 else dt
    S = (j[None, :] // U == jnp.arange(_LANES)[:, None]).astype(s_dt)
    # Tiled taps at full f32 precision: w_row[j] = w[j % U].  Weight prep hoisted out of
    # the kernel; no per-iteration broadcast inside.
    w_row = jnp.tile(weight.astype(jnp.float32), _LANES).reshape(1, _LANES * U)
    b = bias.astype(jnp.float32).reshape(1)

    grid = (Rp // tm,)
    out_rows = pl.pallas_call(
        _upsample_kernel,
        out_shape=jax.ShapeDtypeStruct((Rp, _LANES * U), dt),
        grid_spec=pltpu.PrefetchScalarGridSpec(
            num_scalar_prefetch=0,
            grid=grid,
            in_specs=[
                pl.BlockSpec((tm, _LANES), lambda i: (i, 0)),            # activations
                pl.BlockSpec((_LANES, _LANES * U), lambda i: (0, 0)),    # selection matrix
                pl.BlockSpec((1, _LANES * U), lambda i: (0, 0)),         # tiled f32 taps
                pl.BlockSpec(memory_space=pltpu.SMEM),                   # bias scalar
            ],
            out_specs=pl.BlockSpec((tm, _LANES * U), lambda i: (i, 0)),
        ),
        compiler_params=pltpu.CompilerParams(
            dimension_semantics=("parallel",),
            vmem_limit_bytes=32 * 1024 * 1024,  # raise v5e's 16 MiB default; v7x-safe
        ),
    )(xr, S, w_row, b)

    # ---- unfold (free row-major reshapes) and crop the padding ----------------------
    out = out_rows[:R].reshape(M, Tp * U)
    if Tp != T:
        out = out[:, : T * U]
    return out.reshape(B, C, T * U)


if __name__ == "__main__":
    key = jax.random.PRNGKey(0)

    def run_case(B, C, T, U, case_key, row_tile=None):
        kx, kw, kb = jax.random.split(case_key, 3)
        x = jax.random.normal(kx, (B, C, T), dtype=jnp.float32)
        # ConvTranspose2d(1, 1, kernel_size=(1, U)) weight is (1, 1, 1, U); keep the U taps.
        w = jax.random.normal(kw, (U,), dtype=jnp.float32) * 0.1
        b = jax.random.normal(kb, (1,), dtype=jnp.float32) * 0.1

        out = jax.block_until_ready(
            upsampling_forward(x, w, b, U, row_tile=row_tile))

        # Reference: out[b, c, t*U + k] = x[b, c, t] * w[k] + bias
        ref = (x[:, :, :, None] * w[None, None, None, :]).reshape(B, C, T * U) + b[0]
        assert out.shape == (B, C, T * U)
        err = jnp.max(jnp.abs(out - ref))
        assert jnp.allclose(out, ref, atol=1e-5, rtol=1e-5), (
            f"mismatch for case {(B, C, T, U)}: max abs err {err}")

    k0, k1, k2 = jax.random.split(key, 3)
    # Small shape matching the module's (B x C x T) contract.
    run_case(2, 4, 8, 4, k0)
    # Multi-step grid: exercises row tiling / index_map (T already a multiple of 128).
    run_case(2, 4, 384, 2, k1, row_tile=8)
    # Ragged sizes: T padded to 128 + cropped, rows padded to the row tile, U !| 128.
    run_case(1, 3, 200, 3, k2)

    print("KERNEL_OK")
</pallas_src>

<mosaic_0001>
module attributes {stable_mosaic.version = 11 : i64} {
  func.func @_upsample_kernel(%arg0: i32, %arg1: memref<8x128xf32, #tpu.memory_space<vmem>>, %arg2: memref<128x512xbf16, #tpu.memory_space<vmem>>, %arg3: memref<1x512xf32, #tpu.memory_space<vmem>>, %arg4: memref<1xf32, #tpu.memory_space<smem>>, %arg5: memref<8x512xf32, #tpu.memory_space<vmem>>) attributes {dimension_semantics = [#tpu.dimension_semantics<parallel>], iteration_bounds = array<i64: 1>, scalar_prefetch = 0 : i64, scratch_operands = 0 : i64, tpu.core_type = #tpu.core_type<tc>, window_params = [{transform_indices = @transform_0, window_bounds = array<i64: 8, 128>}, {pipeline_mode = #tpu.pipeline_mode<synchronous>, transform_indices = @transform_1, window_bounds = array<i64: 128, 512>}, {pipeline_mode = #tpu.pipeline_mode<synchronous>, transform_indices = @transform_2, window_bounds = array<i64: 1, 512>}, {transform_indices = @transform_3, window_bounds = array<i64: 1>}, {transform_indices = @transform_4, window_bounds = array<i64: 8, 512>}]} {
    %c0 = arith.constant 0 : index
    %c0_0 = arith.constant 0 : index
    %0 = vector.load %arg1[%c0, %c0_0] : memref<8x128xf32, #tpu.memory_space<vmem>>, vector<8x128xf32>
    %c0_1 = arith.constant 0 : index
    %c0_2 = arith.constant 0 : index
    %1 = vector.load %arg2[%c0_1, %c0_2] : memref<128x512xbf16, #tpu.memory_space<vmem>>, vector<128x512xbf16>
    %2 = arith.truncf %0 : vector<8x128xf32> to vector<8x128xbf16>
    %3 = arith.extf %2 : vector<8x128xbf16> to vector<8x128xf32>
    %4 = arith.subf %0, %3 : vector<8x128xf32>
    %5 = arith.truncf %4 : vector<8x128xf32> to vector<8x128xbf16>
    %6 = arith.extf %5 : vector<8x128xbf16> to vector<8x128xf32>
    %7 = arith.subf %4, %6 : vector<8x128xf32>
    %8 = arith.truncf %7 : vector<8x128xf32> to vector<8x128xbf16>
    %cst = arith.constant dense<0.000000e+00> : vector<8x512xf32>
    %9 = tpu.matmul %2, %1, %cst {dimension_numbers = #tpu.dot_dimension_numbers<[1], [0], [0], [1], [0, 0, 1, 1], [], []>} : vector<8x128xbf16>, vector<128x512xbf16>, vector<8x512xf32> -> vector<8x512xf32>
    %cst_3 = arith.constant dense<0.000000e+00> : vector<8x512xf32>
    %10 = tpu.matmul %5, %1, %cst_3 {dimension_numbers = #tpu.dot_dimension_numbers<[1], [0], [0], [1], [0, 0, 1, 1], [], []>} : vector<8x128xbf16>, vector<128x512xbf16>, vector<8x512xf32> -> vector<8x512xf32>
    %11 = arith.addf %9, %10 : vector<8x512xf32>
    %cst_4 = arith.constant dense<0.000000e+00> : vector<8x512xf32>
    %12 = tpu.matmul %8, %1, %cst_4 {dimension_numbers = #tpu.dot_dimension_numbers<[1], [0], [0], [1], [0, 0, 1, 1], [], []>} : vector<8x128xbf16>, vector<128x512xbf16>, vector<8x512xf32> -> vector<8x512xf32>
    %13 = arith.addf %11, %12 : vector<8x512xf32>
    %c0_5 = arith.constant 0 : index
    %c0_6 = arith.constant 0 : index
    %14 = vector.load %arg3[%c0_5, %c0_6] : memref<1x512xf32, #tpu.memory_space<vmem>>, vector<1x512xf32>
    %15 = vector.broadcast %14 : vector<1x512xf32> to vector<8x512xf32>
    %16 = arith.mulf %13, %15 : vector<8x512xf32>
    %c0_7 = arith.constant 0 : index
    %17 = memref.load %arg4[%c0_7] : memref<1xf32, #tpu.memory_space<smem>>
    %18 = vector.broadcast %17 : f32 to vector<8x512xf32>
    %19 = arith.addf %16, %18 : vector<8x512xf32>
    %c0_8 = arith.constant 0 : index
    %c0_9 = arith.constant 0 : index
    %20 = vector.load %arg5[%c0_8, %c0_9] : memref<8x512xf32, #tpu.memory_space<vmem>>, vector<8x512xf32>
    tpu.vector_store %arg5[%c0_8, %c0_9], %19 {strides = array<i32>} : memref<8x512xf32, #tpu.memory_space<vmem>>, vector<8x512xf32>,
    return
  }
  func.func @transform_0(%arg0: i32) -> (i32, i32) {
    %c0_i32 = arith.constant 0 : i32
    %c0_i32_0 = arith.constant 0 : i32
    return %arg0, %c0_i32 : i32, i32
  }
  func.func @transform_1(%arg0: i32) -> (i32, i32) {
    %c0_i32 = arith.constant 0 : i32
    %c0_i32_0 = arith.constant 0 : i32
    %c0_i32_1 = arith.constant 0 : i32
    return %c0_i32, %c0_i32_0 : i32, i32
  }
  func.func @transform_2(%arg0: i32) -> (i32, i32) {
    %c0_i32 = arith.constant 0 : i32
    %c0_i32_0 = arith.constant 0 : i32
    %c0_i32_1 = arith.constant 0 : i32
    return %c0_i32, %c0_i32_0 : i32, i32
  }
  func.func @transform_3(%arg0: i32) -> i32 {
    %c0_i32 = arith.constant 0 : i32
    %c0_i32_0 = arith.constant 0 : i32
    return %c0_i32 : i32
  }
  func.func @transform_4(%arg0: i32) -> (i32, i32) {
    %c0_i32 = arith.constant 0 : i32
    %c0_i32_0 = arith.constant 0 : i32
    return %arg0, %c0_i32 : i32, i32
  }
}

</mosaic_0001>

<llo_original>
// kernel: tpu_custom_call.1
$region0: #{tpu_custom_call.1}
  #allocation0 [shape = 'u32[]', space=smem, size = 0x4, offset = 0x4, fixed_abs, tag = 'smem constant byte address 0x4 - core index']
  #allocation1 [shape = 'u32[144,128]{1,0:T(1,128)}', space=vmem, size = 0x12000, scoped, tag = 'internal scratch']
  #allocation2 [shape = 'f32[1]{0:T(128)S(6)}', space=smem, size = 0x200, scoped, tag = 'scoped memory for tpu_custom_call.1']
  %s0 = inlined_call_operand.hbm [shape: f32[8,128], index: 0, kind: input, shape index: {}]
  %s1 = inlined_call_operand.hbm [shape: bf16[128,512], index: 1, kind: input, shape index: {}]
  %s2 = inlined_call_operand.vmem [shape: f32[1,512], index: 2, kind: input, shape index: {}]
  %s3 = inlined_call_operand.<no memory space> [shape: f32[1], index: 3, kind: input, shape index: {}]
  %s4 = inlined_call_operand.hbm [shape: f32[8,512], index: 4, kind: output, shape index: {}]
  %s5 = sld [smem:[#allocation0]]
  $region34: #{tpu_custom_call.1} parent=0
    _
  %s7 = ssub.s32 1, %s5
  %s8 = scalar_select 0, %s7, %s5
  %9 = sst [smem:[#allocation2]] %s3
  $region1: #{tpu_custom_call.1} parent=0
    #allocation3 [shape = 'u8[4096]{0}', space=vmem, size = 0x1000, scoped, tag = 'input window, operand 0, single buffered']
    #allocation4 [shape = 's32[1]{0}', space=sflag, size = 0x4, scoped, tag = 'scoped memory for tpu_custom_call.1']
    #allocation5 [shape = 's32[1]{0}', space=sflag, size = 0x4, scoped, tag = 'scoped memory for tpu_custom_call.1']
    #allocation6 [shape = 'u8[131072]{0}', space=vmem, size = 0x20000, scoped, tag = 'input window, operand 1, single buffered']
    #allocation7 [shape = 's32[1]{0}', space=sflag, size = 0x4, scoped, tag = 'scoped memory for tpu_custom_call.1']
    #allocation8 [shape = 'u8[16384]{0}', space=vmem, size = 0x4000, scoped, tag = 'output window, operand 0, single buffered']
    %10 = vsyncpa [#allocation4], 0
    %11 = vsyncpa [#allocation7], 0
    %12 = vsyncpa [#allocation5], 0
    // Predicated region
    $region2: #{tpu_custom_call.1} parent=1 // pred_check
      _
    $region3: #{tpu_custom_call.1} parent=1 // pred_check_branch
      %14 = sbr.rel (0) target = $region5
    $region4: #{tpu_custom_call.1} parent=1 // pred_region
      %s16 = ssub.s32 128, 128
      %17 = vsyncadd [#allocation4], %s16
      %s19 = sshll.u32 [#allocation3], 4
      %s20 = int_to_ptr.vmem [resolvable:$true] %s19
      %22 = dma.hbm_to_vmem [thread:$0]  %s0, 128, %s20, [#allocation4]
    $region5: #{tpu_custom_call.1} parent=1 // pred_fallthru
      _
    // Predicated region
    $region6: #{tpu_custom_call.1} parent=1 // pred_check
      _
    $region7: #{tpu_custom_call.1} parent=1 // pred_check_branch
      %24 = sbr.rel (0) target = $region9
    $region8: #{tpu_custom_call.1} parent=1 // pred_region
      %s26 = ssub.s32 4096, 4096
      %27 = vsyncadd [#allocation7], %s26
      %s28 = sshll.u32 [#allocation6], 4
      %s29 = int_to_ptr.vmem [resolvable:$true] %s28
      %34 = dma.hbm_to_vmem [thread:$0]  %s1, 4096, %s29, [#allocation7], 256, 256, 16
    $region9: #{tpu_custom_call.1} parent=1 // pred_fallthru
      _
    // Predicated region
    $region10: #{tpu_custom_call.1} parent=1 // pred_check
      _
    $region11: #{tpu_custom_call.1} parent=1 // pred_check_branch
      %36 = sbr.rel (0) target = $region13
    $region12: #{tpu_custom_call.1} parent=1 // pred_region
      _
    $region13: #{tpu_custom_call.1} parent=1 // pred_fallthru
      _
    // Predicated region
    $region14: #{tpu_custom_call.1} parent=1 // pred_check
      _
    $region15: #{tpu_custom_call.1} parent=1 // pred_check_branch
      %38 = sbr.rel (0) target = $region17
    $region16: #{tpu_custom_call.1} parent=1 // pred_region
      _
    $region17: #{tpu_custom_call.1} parent=1 // pred_fallthru
      _
    // Predicated region
    $region18: #{tpu_custom_call.1} parent=1 // pred_check
      _
    $region19: #{tpu_custom_call.1} parent=1 // pred_check_branch
      %40 = sbr.rel (0) target = $region21
    $region20: #{tpu_custom_call.1} parent=1 // pred_region
      %41 = dma.done [#allocation4], 128
    $region21: #{tpu_custom_call.1} parent=1 // pred_fallthru
      _
    // Predicated region
    $region22: #{tpu_custom_call.1} parent=1 // pred_check
      _
    $region23: #{tpu_custom_call.1} parent=1 // pred_check_branch
      %43 = sbr.rel (0) target = $region25
    $region24: #{tpu_custom_call.1} parent=1 // pred_region
      %44 = dma.done [#allocation7], 4096
    $region25: #{tpu_custom_call.1} parent=1 // pred_fallthru
      _
    %v46 = vld [vmem:[#allocation3] sm:$0xff]
    %v47 = vld [vmem:[#allocation6] sm:$0xff]
    %v48 = vld [vmem:[#allocation6 + $0x8] sm:$0xff]
    %v49 = vld [vmem:[#allocation6 + $0x10] sm:$0xff]
    %v50 = vld [vmem:[#allocation6 + $0x18] sm:$0xff]
    %v51 = vld [vmem:[#allocation6 + $0x20] sm:$0xff]
    %v52 = vld [vmem:[#allocation6 + $0x28] sm:$0xff]
    %v53 = vld [vmem:[#allocation6 + $0x30] sm:$0xff]
    %v54 = vld [vmem:[#allocation6 + $0x38] sm:$0xff]
    %v55 = vld [vmem:[#allocation6 + $0x40] sm:$0xff]
    %v56 = vld [vmem:[#allocation6 + $0x48] sm:$0xff]
    %v57 = vld [vmem:[#allocation6 + $0x50] sm:$0xff]
    %v58 = vld [vmem:[#allocation6 + $0x58] sm:$0xff]
    %v59 = vld [vmem:[#allocation6 + $0x60] sm:$0xff]
    %v60 = vld [vmem:[#allocation6 + $0x68] sm:$0xff]
    %v61 = vld [vmem:[#allocation6 + $0x70] sm:$0xff]
    %v62 = vld [vmem:[#allocation6 + $0x78] sm:$0xff]
    %v63 = vld [vmem:[#allocation6 + $0x80] sm:$0xff]
    %v64 = vld [vmem:[#allocation6 + $0x88] sm:$0xff]
    %v65 = vld [vmem:[#allocation6 + $0x90] sm:$0xff]
    %v66 = vld [vmem:[#allocation6 + $0x98] sm:$0xff]
    %v67 = vld [vmem:[#allocation6 + $0xa0] sm:$0xff]
    %v68 = vld [vmem:[#allocation6 + $0xa8] sm:$0xff]
    %v69 = vld [vmem:[#allocation6 + $0xb0] sm:$0xff]
    %v70 = vld [vmem:[#allocation6 + $0xb8] sm:$0xff]
    %v71 = vld [vmem:[#allocation6 + $0xc0] sm:$0xff]
    %v72 = vld [vmem:[#allocation6 + $0xc8] sm:$0xff]
    %v73 = vld [vmem:[#allocation6 + $0xd0] sm:$0xff]
    %v74 = vld [vmem:[#allocation6 + $0xd8] sm:$0xff]
    %v75 = vld [vmem:[#allocation6 + $0xe0] sm:$0xff]
    %v76 = vld [vmem:[#allocation6 + $0xe8] sm:$0xff]
    %v77 = vld [vmem:[#allocation6 + $0xf0] sm:$0xff]
    %v78 = vld [vmem:[#allocation6 + $0xf8] sm:$0xff]
    %v79 = vpack.c.bf16 %v46, %v46
    %v80 = vunpack.c.l.bf16 %v79
    %v81 = vsub.f32 %v46, %v80
    %v82 = vpack.c.bf16 %v81, %v81
    %v83 = vunpack.c.l.bf16 %v82
    %v84 = vsub.f32 %v81, %v83
    %v85 = vpack.c.bf16 %v84, %v84
    %v118 = vunpack.c.l.b16 %v47
    %v119 = vunpack.c.h.b16 %v47
    %v120 = vunpack.c.l.b16 %v48
    %v121 = vunpack.c.h.b16 %v48
    %v122 = vunpack.c.l.b16 %v49
    %v123 = vunpack.c.h.b16 %v49
    %v124 = vunpack.c.l.b16 %v50
    %v125 = vunpack.c.h.b16 %v50
    %v126 = vunpack.c.l.b16 %v51
    %v127 = vunpack.c.h.b16 %v51
    %v128 = vunpack.c.l.b16 %v52
    %v129 = vunpack.c.h.b16 %v52
    %v130 = vunpack.c.l.b16 %v53
    %v131 = vunpack.c.h.b16 %v53
    %v132 = vunpack.c.l.b16 %v54
    %v133 = vunpack.c.h.b16 %v54
    %v134 = vunpack.c.l.b16 %v55
    %v135 = vunpack.c.h.b16 %v55
    %v136 = vunpack.c.l.b16 %v56
    %v137 = vunpack.c.h.b16 %v56
    %v138 = vunpack.c.l.b16 %v57
    %v139 = vunpack.c.h.b16 %v57
    %v140 = vunpack.c.l.b16 %v58
    %v141 = vunpack.c.h.b16 %v58
    %v142 = vunpack.c.l.b16 %v59
    %v143 = vunpack.c.h.b16 %v59
    %v144 = vunpack.c.l.b16 %v60
    %v145 = vunpack.c.h.b16 %v60
    %v146 = vunpack.c.l.b16 %v61
    %v147 = vunpack.c.h.b16 %v61
    %v148 = vunpack.c.l.b16 %v62
    %v149 = vunpack.c.h.b16 %v62
    %v150 = vunpack.c.l.b16 %v63
    %v151 = vunpack.c.h.b16 %v63
    %v152 = vunpack.c.l.b16 %v64
    %v153 = vunpack.c.h.b16 %v64
    %v154 = vunpack.c.l.b16 %v65
    %v155 = vunpack.c.h.b16 %v65
    %v156 = vunpack.c.l.b16 %v66
    %v157 = vunpack.c.h.b16 %v66
    %v158 = vunpack.c.l.b16 %v67
    %v159 = vunpack.c.h.b16 %v67
    %v160 = vunpack.c.l.b16 %v68
    %v161 = vunpack.c.h.b16 %v68
    %v162 = vunpack.c.l.b16 %v69
    %v163 = vunpack.c.h.b16 %v69
    %v164 = vunpack.c.l.b16 %v70
    %v165 = vunpack.c.h.b16 %v70
    %v166 = vunpack.c.l.b16 %v71
    %v167 = vunpack.c.h.b16 %v71
    %v168 = vunpack.c.l.b16 %v72
    %v169 = vunpack.c.h.b16 %v72
    %v170 = vunpack.c.l.b16 %v73
    %v171 = vunpack.c.h.b16 %v73
    %v172 = vunpack.c.l.b16 %v74
    %v173 = vunpack.c.h.b16 %v74
    %v174 = vunpack.c.l.b16 %v75
    %v175 = vunpack.c.h.b16 %v75
    %v176 = vunpack.c.l.b16 %v76
    %v177 = vunpack.c.h.b16 %v76
    %v178 = vunpack.c.l.b16 %v77
    %v179 = vunpack.c.h.b16 %v77
    %v180 = vunpack.c.l.b16 %v78
    %v181 = vunpack.c.h.b16 %v78
    %v182 = vpack.c.b16 %v122, %v118
    %v183 = vpack.c.b16 %v123, %v119
    %v184 = vpack.c.b16 %v124, %v120
    %v185 = vpack.c.b16 %v125, %v121
    %v186 = vpack.c.b16 %v130, %v126
    %v187 = vpack.c.b16 %v131, %v127
    %v188 = vpack.c.b16 %v132, %v128
    %v189 = vpack.c.b16 %v133, %v129
    %v190 = vpack.c.b16 %v138, %v134
    %v191 = vpack.c.b16 %v139, %v135
    %v192 = vpack.c.b16 %v140, %v136
    %v193 = vpack.c.b16 %v141, %v137
    %v194 = vpack.c.b16 %v146, %v142
    %v195 = vpack.c.b16 %v147, %v143
    %v196 = vpack.c.b16 %v148, %v144
    %v197 = vpack.c.b16 %v149, %v145
    %v198 = vpack.c.b16 %v154, %v150
    %v199 = vpack.c.b16 %v155, %v151
    %v200 = vpack.c.b16 %v156, %v152
    %v201 = vpack.c.b16 %v157, %v153
    %v202 = vpack.c.b16 %v162, %v158
    %v203 = vpack.c.b16 %v163, %v159
    %v204 = vpack.c.b16 %v164, %v160
    %v205 = vpack.c.b16 %v165, %v161
    %v206 = vpack.c.b16 %v170, %v166
    %v207 = vpack.c.b16 %v171, %v167
    %v208 = vpack.c.b16 %v172, %v168
    %v209 = vpack.c.b16 %v173, %v169
    %v210 = vpack.c.b16 %v178, %v174
    %v211 = vpack.c.b16 %v179, %v175
    %v212 = vpack.c.b16 %v180, %v176
    %v213 = vpack.c.b16 %v181, %v177
    %246 = vmatprep.subr.bf16.mxu0 %v183
    %247 = vmatpush1.bf16.msra.mxu0 %v182
    %248 = vmatprep.subr.bf16.mxu0 %v187
    %249 = vmatpush1.bf16.msra.mxu0 %v186
    %250 = vmatprep.subr.bf16.mxu0 %v191
    %251 = vmatpush1.bf16.msra.mxu0 %v190
    %252 = vmatprep.subr.bf16.mxu0 %v195
    %253 = vmatpush1.bf16.msra.mxu0 %v194
    %254 = vmatprep.subr.bf16.mxu0 %v199
    %255 = vmatpush1.bf16.msra.mxu0 %v198
    %256 = vmatprep.subr.bf16.mxu0 %v203
    %257 = vmatpush1.bf16.msra.mxu0 %v202
    %258 = vmatprep.subr.bf16.mxu0 %v207
    %259 = vmatpush1.bf16.msra.mxu0 %v206
    %260 = vmatprep.subr.bf16.mxu0 %v211
    %261 = vmatpush1.bf16.msra.mxu0 %v210
    %262 = vmatprep.subr.bf16.mxu0 0
    %263 = vmatpush1.bf16.msra.mxu0 0
    %264 = vmatprep.subr.bf16.mxu0 0
    %265 = vmatpush1.bf16.msra.mxu0 0
    %266 = vmatprep.subr.bf16.mxu0 0
    %267 = vmatpush1.bf16.msra.mxu0 0
    %268 = vmatprep.subr.bf16.mxu0 0
    %269 = vmatpush1.bf16.msra.mxu0 0
    %270 = vmatprep.subr.bf16.mxu0 0
    %271 = vmatpush1.bf16.msra.mxu0 0
    %272 = vmatprep.subr.bf16.mxu0 0
    %273 = vmatpush1.bf16.msra.mxu0 0
    %274 = vmatprep.subr.bf16.mxu0 0
    %275 = vmatpush1.bf16.msra.mxu0 0
    %276 = vmatprep.subr.bf16.mxu0 0
    %277 = vmatpush1.bf16.msra.mxu0 0
    %278 = vmatprep.mubr.bf16.mxu0 0
    %279 = vmatmul.mubr.bf16.gmra.mrb[0].mxu0 %v82
    %v280 = vpop.f32.mrb[0].mxu0
    %v281 = vadd.f32 0.0, %v280
    %v282 = vpop.f32.mrb[0].mxu0
    %v283 = vadd.f32 0.0, %v282
    %v284 = vpop.f32.mrb[0].mxu0
    %v285 = vpop.f32.mrb[0].mxu0
    %286 = vdwg.mxu0
    %287 = vmatprep.subr.bf16.mxu0 %v185
    %288 = vmatpush1.bf16.msra.mxu0 %v184
    %289 = vmatprep.subr.bf16.mxu0 %v189
    %290 = vmatpush1.bf16.msra.mxu0 %v188
    %291 = vmatprep.subr.bf16.mxu0 %v193
    %292 = vmatpush1.bf16.msra.mxu0 %v192
    %293 = vmatprep.subr.bf16.mxu0 %v197
    %294 = vmatpush1.bf16.msra.mxu0 %v196
    %295 = vmatprep.subr.bf16.mxu0 %v201
    %296 = vmatpush1.bf16.msra.mxu0 %v200
    %297 = vmatprep.subr.bf16.mxu0 %v205
    %298 = vmatpush1.bf16.msra.mxu0 %v204
    %299 = vmatprep.subr.bf16.mxu0 %v209
    %300 = vmatpush1.bf16.msra.mxu0 %v208
    %301 = vmatprep.subr.bf16.mxu0 %v213
    %302 = vmatpush1.bf16.msra.mxu0 %v212
    %303 = vmatprep.subr.bf16.mxu0 0
    %304 = vmatpush1.bf16.msra.mxu0 0
    %305 = vmatprep.subr.bf16.mxu0 0
    %306 = vmatpush1.bf16.msra.mxu0 0
    %307 = vmatprep.subr.bf16.mxu0 0
    %308 = vmatpush1.bf16.msra.mxu0 0
    %309 = vmatprep.subr.bf16.mxu0 0
    %310 = vmatpush1.bf16.msra.mxu0 0
    %311 = vmatprep.subr.bf16.mxu0 0
    %312 = vmatpush1.bf16.msra.mxu0 0
    %313 = vmatprep.subr.bf16.mxu0 0
    %314 = vmatpush1.bf16.msra.mxu0 0
    %315 = vmatprep.subr.bf16.mxu0 0
    %316 = vmatpush1.bf16.msra.mxu0 0
    %317 = vmatprep.subr.bf16.mxu0 0
    %318 = vmatpush1.bf16.msra.mxu0 0
    %319 = vmatprep.mubr.bf16.mxu0 0
    %320 = vmatmul.mubr.bf16.gmra.mrb[0].mxu0 %v82
    %v321 = vpop.f32.mrb[0].mxu0
    %v322 = vadd.f32 0.0, %v321
    %v323 = vpop.f32.mrb[0].mxu0
    %v324 = vadd.f32 0.0, %v323
    %v325 = vpop.f32.mrb[0].mxu0
    %v326 = vpop.f32.mrb[0].mxu0
    %327 = vdwg.mxu0
    %328 = vmatprep.subr.bf16.mxu0 %v183
    %329 = vmatpush1.bf16.msra.mxu0 %v182
    %330 = vmatprep.subr.bf16.mxu0 %v187
    %331 = vmatpush1.bf16.msra.mxu0 %v186
    %332 = vmatprep.subr.bf16.mxu0 %v191
    %333 = vmatpush1.bf16.msra.mxu0 %v190
    %334 = vmatprep.subr.bf16.mxu0 %v195
    %335 = vmatpush1.bf16.msra.mxu0 %v194
    %336 = vmatprep.subr.bf16.mxu0 %v199
    %337 = vmatpush1.bf16.msra.mxu0 %v198
    %338 = vmatprep.subr.bf16.mxu0 %v203
    %339 = vmatpush1.bf16.msra.mxu0 %v202
    %340 = vmatprep.subr.bf16.mxu0 %v207
    %341 = vmatpush1.bf16.msra.mxu0 %v206
    %342 = vmatprep.subr.bf16.mxu0 %v211
    %343 = vmatpush1.bf16.msra.mxu0 %v210
    %344 = vmatprep.subr.bf16.mxu0 0
    %345 = vmatpush1.bf16.msra.mxu0 0
    %346 = vmatprep.subr.bf16.mxu0 0
    %347 = vmatpush1.bf16.msra.mxu0 0
    %348 = vmatprep.subr.bf16.mxu0 0
    %349 = vmatpush1.bf16.msra.mxu0 0
    %350 = vmatprep.subr.bf16.mxu0 0
    %351 = vmatpush1.bf16.msra.mxu0 0
    %352 = vmatprep.subr.bf16.mxu0 0
    %353 = vmatpush1.bf16.msra.mxu0 0
    %354 = vmatprep.subr.bf16.mxu0 0
    %355 = vmatpush1.bf16.msra.mxu0 0
    %356 = vmatprep.subr.bf16.mxu0 0
    %357 = vmatpush1.bf16.msra.mxu0 0
    %358 = vmatprep.subr.bf16.mxu0 0
    %359 = vmatpush1.bf16.msra.mxu0 0
    %360 = vmatprep.mubr.bf16.mxu0 0
    %361 = vmatmul.mubr.bf16.gmra.mrb[0].mxu0 %v79
    %v362 = vpop.f32.mrb[0].mxu0
    %v363 = vadd.f32 %v281, %v362
    %v364 = vpop.f32.mrb[0].mxu0
    %v365 = vadd.f32 %v283, %v364
    %v366 = vpop.f32.mrb[0].mxu0
    %v367 = vpop.f32.mrb[0].mxu0
    %368 = vdwg.mxu0
    %369 = vmatprep.subr.bf16.mxu0 %v185
    %370 = vmatpush1.bf16.msra.mxu0 %v184
    %371 = vmatprep.subr.bf16.mxu0 %v189
    %372 = vmatpush1.bf16.msra.mxu0 %v188
    %373 = vmatprep.subr.bf16.mxu0 %v193
    %374 = vmatpush1.bf16.msra.mxu0 %v192
    %375 = vmatprep.subr.bf16.mxu0 %v197
    %376 = vmatpush1.bf16.msra.mxu0 %v196
    %377 = vmatprep.subr.bf16.mxu0 %v201
    %378 = vmatpush1.bf16.msra.mxu0 %v200
    %379 = vmatprep.subr.bf16.mxu0 %v205
    %380 = vmatpush1.bf16.msra.mxu0 %v204
    %381 = vmatprep.subr.bf16.mxu0 %v209
    %382 = vmatpush1.bf16.msra.mxu0 %v208
    %383 = vmatprep.subr.bf16.mxu0 %v213
    %384 = vmatpush1.bf16.msra.mxu0 %v212
    %385 = vmatprep.subr.bf16.mxu0 0
    %386 = vmatpush1.bf16.msra.mxu0 0
    %387 = vmatprep.subr.bf16.mxu0 0
    %388 = vmatpush1.bf16.msra.mxu0 0
    %389 = vmatprep.subr.bf16.mxu0 0
    %390 = vmatpush1.bf16.msra.mxu0 0
    %391 = vmatprep.subr.bf16.mxu0 0
    %392 = vmatpush1.bf16.msra.mxu0 0
    %393 = vmatprep.subr.bf16.mxu0 0
    %394 = vmatpush1.bf16.msra.mxu0 0
    %395 = vmatprep.subr.bf16.mxu0 0
    %396 = vmatpush1.bf16.msra.mxu0 0
    %397 = vmatprep.subr.bf16.mxu0 0
    %398 = vmatpush1.bf16.msra.mxu0 0
    %399 = vmatprep.subr.bf16.mxu0 0
    %400 = vmatpush1.bf16.msra.mxu0 0
    %401 = vmatprep.mubr.bf16.mxu0 0
    %402 = vmatmul.mubr.bf16.gmra.mrb[0].mxu0 %v79
    %v403 = vpop.f32.mrb[0].mxu0
    %v404 = vadd.f32 %v322, %v403
    %v405 = vpop.f32.mrb[0].mxu0
    %v406 = vadd.f32 %v324, %v405
    %v407 = vpop.f32.mrb[0].mxu0
    %v408 = vpop.f32.mrb[0].mxu0
    %409 = vdwg.mxu0
    %410 = vmatprep.subr.bf16.mxu0 %v183
    %411 = vmatpush1.bf16.msra.mxu0 %v182
    %412 = vmatprep.subr.bf16.mxu0 %v187
    %413 = vmatpush1.bf16.msra.mxu0 %v186
    %414 = vmatprep.subr.bf16.mxu0 %v191
    %415 = vmatpush1.bf16.msra.mxu0 %v190
    %416 = vmatprep.subr.bf16.mxu0 %v195
    %417 = vmatpush1.bf16.msra.mxu0 %v194
    %418 = vmatprep.subr.bf16.mxu0 %v199
    %419 = vmatpush1.bf16.msra.mxu0 %v198
    %420 = vmatprep.subr.bf16.mxu0 %v203
    %421 = vmatpush1.bf16.msra.mxu0 %v202
    %422 = vmatprep.subr.bf16.mxu0 %v207
    %423 = vmatpush1.bf16.msra.mxu0 %v206
    %424 = vmatprep.subr.bf16.mxu0 %v211
    %425 = vmatpush1.bf16.msra.mxu0 %v210
    %426 = vmatprep.subr.bf16.mxu0 0
    %427 = vmatpush1.bf16.msra.mxu0 0
    %428 = vmatprep.subr.bf16.mxu0 0
    %429 = vmatpush1.bf16.msra.mxu0 0
    %430 = vmatprep.subr.bf16.mxu0 0
    %431 = vmatpush1.bf16.msra.mxu0 0
    %432 = vmatprep.subr.bf16.mxu0 0
    %433 = vmatpush1.bf16.msra.mxu0 0
    %434 = vmatprep.subr.bf16.mxu0 0
    %435 = vmatpush1.bf16.msra.mxu0 0
    %436 = vmatprep.subr.bf16.mxu0 0
    %437 = vmatpush1.bf16.msra.mxu0 0
    %438 = vmatprep.subr.bf16.mxu0 0
    %439 = vmatpush1.bf16.msra.mxu0 0
    %440 = vmatprep.subr.bf16.mxu0 0
    %441 = vmatpush1.bf16.msra.mxu0 0
    %442 = vmatprep.mubr.bf16.mxu0 0
    %443 = vmatmul.mubr.bf16.gmra.mrb[0].mxu0 %v85
    %v444 = vpop.f32.mrb[0].mxu0
    %v445 = vadd.f32 0.0, %v444
    %v446 = vpop.f32.mrb[0].mxu0
    %v447 = vadd.f32 0.0, %v446
    %v448 = vpop.f32.mrb[0].mxu0
    %v449 = vpop.f32.mrb[0].mxu0
    %450 = vdwg.mxu0
    %451 = vmatprep.subr.bf16.mxu0 %v185
    %452 = vmatpush1.bf16.msra.mxu0 %v184
    %453 = vmatprep.subr.bf16.mxu0 %v189
    %454 = vmatpush1.bf16.msra.mxu0 %v188
    %455 = vmatprep.subr.bf16.mxu0 %v193
    %456 = vmatpush1.bf16.msra.mxu0 %v192
    %457 = vmatprep.subr.bf16.mxu0 %v197
    %458 = vmatpush1.bf16.msra.mxu0 %v196
    %459 = vmatprep.subr.bf16.mxu0 %v201
    %460 = vmatpush1.bf16.msra.mxu0 %v200
    %461 = vmatprep.subr.bf16.mxu0 %v205
    %462 = vmatpush1.bf16.msra.mxu0 %v204
    %463 = vmatprep.subr.bf16.mxu0 %v209
    %464 = vmatpush1.bf16.msra.mxu0 %v208
    %465 = vmatprep.subr.bf16.mxu0 %v213
    %466 = vmatpush1.bf16.msra.mxu0 %v212
    %467 = vmatprep.subr.bf16.mxu0 0
    %468 = vmatpush1.bf16.msra.mxu0 0
    %469 = vmatprep.subr.bf16.mxu0 0
    %470 = vmatpush1.bf16.msra.mxu0 0
    %471 = vmatprep.subr.bf16.mxu0 0
    %472 = vmatpush1.bf16.msra.mxu0 0
    %473 = vmatprep.subr.bf16.mxu0 0
    %474 = vmatpush1.bf16.msra.mxu0 0
    %475 = vmatprep.subr.bf16.mxu0 0
    %476 = vmatpush1.bf16.msra.mxu0 0
    %477 = vmatprep.subr.bf16.mxu0 0
    %478 = vmatpush1.bf16.msra.mxu0 0
    %479 = vmatprep.subr.bf16.mxu0 0
    %480 = vmatpush1.bf16.msra.mxu0 0
    %481 = vmatprep.subr.bf16.mxu0 0
    %482 = vmatpush1.bf16.msra.mxu0 0
    %483 = vmatprep.mubr.bf16.mxu0 0
    %484 = vmatmul.mubr.bf16.gmra.mrb[0].mxu0 %v85
    %v485 = vpop.f32.mrb[0].mxu0
    %v486 = vadd.f32 0.0, %v485
    %v487 = vpop.f32.mrb[0].mxu0
    %v488 = vadd.f32 0.0, %v487
    %v489 = vpop.f32.mrb[0].mxu0
    %v490 = vpop.f32.mrb[0].mxu0
    %491 = vdwg.mxu0
    %v492 = vadd.f32 %v363, %v445
    %v493 = vadd.f32 %v365, %v447
    %v494 = vadd.f32 %v404, %v486
    %v495 = vadd.f32 %v406, %v488
    %v496 = vld [vmem:[%s2] sm:$0xf]
    %v498 = vlaneseq
    %v499 = vshrl.u32 %v498, 7
    %v500 = vsub.s32 0, %v499
    %v501 = vrot.slane %v496, %v500
    %v502 = vlaneseq
    %v503 = vshrl.u32 %v502, 7
    %v504 = vsub.s32 1, %v503
    %v505 = vrot.slane %v496, %v504
    %v506 = vlaneseq
    %v507 = vshrl.u32 %v506, 7
    %v508 = vsub.s32 2, %v507
    %v509 = vrot.slane %v496, %v508
    %v510 = vlaneseq
    %v511 = vshrl.u32 %v510, 7
    %v512 = vsub.s32 3, %v511
    %v513 = vrot.slane %v496, %v512
    %v518 = vmul.f32 %v492, %v501
    %v519 = vmul.f32 %v493, %v505
    %v520 = vmul.f32 %v494, %v509
    %v521 = vmul.f32 %v495, %v513
    %s522 = sld [smem:[#allocation2]]
    %v523 = vstv %s522
    %v524 = vadd.f32 %v518, %v523
    %v525 = vadd.f32 %v519, %v523
    %v526 = vadd.f32 %v520, %v523
    %v527 = vadd.f32 %v521, %v523
    %528 = vst [vmem:[#allocation8] sm:$0xff] %v524
    %529 = vst [vmem:[#allocation8 + $0x8] sm:$0xff] %v525
    %530 = vst [vmem:[#allocation8 + $0x10] sm:$0xff] %v526
    %531 = vst [vmem:[#allocation8 + $0x18] sm:$0xff] %v527
    // Predicated region
    $region26: #{tpu_custom_call.1} parent=1 // pred_check
      _
    $region27: #{tpu_custom_call.1} parent=1 // pred_check_branch
      %533 = sbr.rel (0) target = $region29
    $region28: #{tpu_custom_call.1} parent=1 // pred_region
      %s535 = ssub.s32 512, 512
      %536 = vsyncadd [#allocation5], %s535
      %s538 = sshll.u32 [#allocation8], 4
      %s539 = int_to_ptr.vmem [resolvable:$true] %s538
      %541 = dma.vmem_to_hbm [thread:$0]  %s539, 512, %s4, [#allocation5]
    $region29: #{tpu_custom_call.1} parent=1 // pred_fallthru
      _
    // Predicated region
    $region30: #{tpu_custom_call.1} parent=1 // pred_check
      _
    $region31: #{tpu_custom_call.1} parent=1 // pred_check_branch
      %543 = sbr.rel (0) target = $region33
    $region32: #{tpu_custom_call.1} parent=1 // pred_region
      %544 = dma.done [#allocation5], 512
    $region33: #{tpu_custom_call.1} parent=1 // pred_fallthru
      _
    %545 = vsyncpa [#allocation4], 1
    %546 = vsyncpa [#allocation7], 1
    %547 = vsyncpa [#allocation5], 1

</llo_original>
